<compile_context>
chip_gen: v7x
topology: tpu7x:2x2x1
jax: 0.10.0
libtpu: 0.0.40
codegen_flags: <defaults>
</compile_context>

<pallas_src>
import functools

import jax
import jax.numpy as jnp
from jax.experimental import pallas as pl
from jax.experimental.pallas import tpu as pltpu


def _round_up(n, m):
    return ((n + m - 1) // m) * m


def _maybe_cast(a, dt):
    return a if a.dtype == dt else a.astype(dt)


def _pad2d(a, rows, cols):
    pr, pc = rows - a.shape[0], cols - a.shape[1]
    if pr or pc:
        a = jnp.pad(a, ((0, pr), (0, pc)))
    return a


def _pad1d(a, n):
    p = n - a.shape[0]
    if p:
        a = jnp.pad(a, (0, p))
    return a


def _vmem_capacity_bytes():
    try:
        return int(pltpu.get_tpu_info().vmem_capacity_bytes)
    except Exception:
        return 64 * 1024 * 1024  # conservative (v7x per-TC) fallback


# --------------------------------------------------------------------------
# Kernel bodies.
# --------------------------------------------------------------------------
def _ffn_kernel_acc(x_ref, w1_ref, b1_ref, w2_ref, b2_ref, o_ref, acc_ref):
    # Used when the output dtype is NOT f32 (needs a separate f32 accumulator).
    # x_ref:  (tm, dp)      row tile (resident across the hidden axis)
    # w1_ref: (dp, th)      hidden chunk of W1
    # b1_ref: (1, th)  f32  hidden chunk of b1
    # w2_ref: (th, dp)      hidden chunk of W2
    # b2_ref: (1, dp)  f32  full b2
    # o_ref:  (tm, dp)      output tile (written on the last hidden chunk)
    # acc_ref:(tm, dp) f32  VMEM accumulator scratch
    k = pl.program_id(1)

    @pl.when(k == 0)
    def _():
        acc_ref[...] = jnp.zeros_like(acc_ref)

    # Linear1 chunk + bias + ReLU (elementwise over hidden -> valid per chunk).
    # Dropout: identity (inference).
    h = jnp.dot(x_ref[...], w1_ref[...], preferred_element_type=jnp.float32)
    h = jnp.maximum(h + b1_ref[...], 0.0)

    # Linear2 chunk accumulated in f32.
    acc_ref[...] += jnp.dot(h.astype(w2_ref.dtype), w2_ref[...],
                            preferred_element_type=jnp.float32)

    @pl.when(k == pl.num_programs(1) - 1)
    def _():
        o_ref[...] = (acc_ref[...] + b2_ref[...]).astype(o_ref.dtype)


def _ffn_kernel_inplace(x_ref, w1_ref, b1_ref, w2_ref, b2_ref, o_ref):
    # Used when the output dtype IS f32: the output block is VMEM-resident
    # across the hidden axis, so accumulate directly into it (no acc scratch,
    # no final copy/cast).
    k = pl.program_id(1)

    @pl.when(k == 0)
    def _():
        o_ref[...] = jnp.broadcast_to(b2_ref[...], o_ref.shape)

    h = jnp.dot(x_ref[...], w1_ref[...], preferred_element_type=jnp.float32)
    h = jnp.maximum(h + b1_ref[...], 0.0)
    o_ref[...] += jnp.dot(h.astype(w2_ref.dtype), w2_ref[...],
                          preferred_element_type=jnp.float32)


# --------------------------------------------------------------------------
# Wrapper.
# --------------------------------------------------------------------------
@functools.partial(jax.jit,
                   static_argnames=("block_m", "block_h", "compute_dtype"))
def positionwise_feed_forward(x, w1, b1, w2, b2, *,
                              block_m=None, block_h=None, compute_dtype=None):
    """x: (batch, seq, d_model) -> (batch, seq, d_model).

    compute_dtype: dtype used for x / W1 / W2 in the matmuls.  Defaults to
    bfloat16 when x is float32 (accumulation and biases stay f32); pass
    "float32" for exact f32 math.  For best performance pass weights already
    cast to the compute dtype so the wrapper's cast is a no-op.
    """
    batch, seq, d_model = x.shape
    hidden = w1.shape[1]
    M = batch * seq

    if compute_dtype is None:
        cdt = jnp.dtype(jnp.bfloat16) if x.dtype == jnp.float32 \
            else jnp.dtype(x.dtype)
    else:
        cdt = jnp.dtype(compute_dtype)
    out_dtype = jnp.dtype(x.dtype)
    # f32 output -> accumulate directly into the output block (no scratch).
    use_scratch = out_dtype != jnp.dtype(jnp.float32)

    itemsize = cdt.itemsize
    out_itemsize = out_dtype.itemsize

    # ---- Generation-aware VMEM budget & tile defaults -----------------------
    vmem_cap = _vmem_capacity_bytes()
    big_vmem = vmem_cap >= 100 * 1024 * 1024           # v5e / v6e: 128 MiB
    if block_m is None:
        block_m = 1024 if big_vmem else 512
    if block_h is None:
        block_h = 1024 if big_vmem else 512
    vmem_limit = (100 if big_vmem else 56) * 1024 * 1024

    row_align = 16 if cdt == jnp.dtype(jnp.bfloat16) else 8
    dp = _round_up(d_model, 128)                        # lane-dense features
    tm = _round_up(min(block_m, _round_up(M, row_align)), row_align)
    th = _round_up(min(block_h, _round_up(hidden, 128)), 128)

    def vmem_bytes(tm_, th_):
        return (2 * tm_ * dp * itemsize                 # x tile (2-buffered)
                + 2 * dp * th_ * itemsize               # w1 chunk
                + 2 * th_ * dp * itemsize               # w2 chunk
                + 2 * (th_ + dp) * 4                    # biases
                + 2 * tm_ * dp * out_itemsize           # out tile
                + (tm_ * dp * 4 if use_scratch else 0)  # f32 accumulator
                + tm_ * th_ * 4)                        # h intermediate

    # Shrink tiles until the working set fits the per-generation VMEM limit.
    while vmem_bytes(tm, th) > int(0.9 * vmem_limit):
        if th > 128 and th >= tm:
            th = max(128, (th // 2 // 128) * 128)
        elif tm > row_align:
            tm = max(row_align, (tm // 2 // row_align) * row_align)
        elif th > 128:
            th = max(128, (th // 2 // 128) * 128)
        else:
            break

    Mp = _round_up(M, tm)
    # Degenerate-grid guard: keep >=2 row tiles so the "parallel" axis can be
    # sharded across v7x's two TensorCores / megacore.
    while Mp // tm == 1:
        tm_new = max(row_align, _round_up(tm // 2, row_align))
        if tm_new >= tm or _round_up(M, tm_new) // tm_new < 2:
            break
        tm = tm_new
        Mp = _round_up(M, tm)

    hp = _round_up(_round_up(hidden, 128), th)

    # ---- Pad / cast inputs (skipped when already aligned / right dtype).
    # Zero padding is numerically exact: padded hidden units give ReLU(0)=0
    # and padded W2 rows are zero; padded rows / output columns are sliced
    # away at the end.
    x2d = _pad2d(_maybe_cast(x.reshape(M, d_model), cdt), Mp, dp)
    w1p = _pad2d(_maybe_cast(w1, cdt), dp, hp)
    w2p = _pad2d(_maybe_cast(w2, cdt), hp, dp)
    b1p = _pad1d(_maybe_cast(b1, jnp.float32), hp).reshape(1, hp)
    b2p = _pad1d(_maybe_cast(b2, jnp.float32), dp).reshape(1, dp)

    grid = (Mp // tm, hp // th)
    n_row_tiles = grid[0]

    cost = pl.CostEstimate(
        flops=4 * Mp * dp * hp,                            # two matmuls
        transcendentals=0,
        bytes_accessed=(Mp * dp * itemsize                 # x read once
                        + n_row_tiles * dp * hp * itemsize  # w1 per row tile
                        + n_row_tiles * hp * dp * itemsize  # w2 per row tile
                        + Mp * dp * out_itemsize),          # output write
    )

    kernel = _ffn_kernel_acc if use_scratch else _ffn_kernel_inplace
    scratch_shapes = ([pltpu.VMEM((tm, dp), jnp.float32)]
                      if use_scratch else [])

    out2d = pl.pallas_call(
        kernel,
        out_shape=jax.ShapeDtypeStruct((Mp, dp), out_dtype),
        grid_spec=pltpu.PrefetchScalarGridSpec(
            num_scalar_prefetch=0,
            grid=grid,
            in_specs=[
                pl.BlockSpec((tm, dp), lambda i, k: (i, 0)),   # x row tile
                pl.BlockSpec((dp, th), lambda i, k: (0, k)),   # w1 hidden chunk
                pl.BlockSpec((1, th), lambda i, k: (0, k)),    # b1 hidden chunk
                pl.BlockSpec((th, dp), lambda i, k: (k, 0)),   # w2 hidden chunk
                pl.BlockSpec((1, dp), lambda i, k: (0, 0)),    # b2 (full)
            ],
            out_specs=pl.BlockSpec((tm, dp), lambda i, k: (i, 0)),
            scratch_shapes=scratch_shapes,
        ),
        compiler_params=pltpu.CompilerParams(
            dimension_semantics=("parallel", "arbitrary"),
            vmem_limit_bytes=vmem_limit,
        ),
        cost_estimate=cost,
    )(x2d, w1p, b1p, w2p, b2p)

    return out2d[:M, :d_model].reshape(batch, seq, d_model)


# --------------------------------------------------------------------------
# Init + reference + tests.
# --------------------------------------------------------------------------
def init_params(key, d_model, hidden, dtype=jnp.float32):
    """nn.Linear-style init: U(-1/sqrt(fan_in), 1/sqrt(fan_in)).

    Weights stored pre-transposed as (in, out) so the kernel does x @ W.
    """
    k1, k2, k3, k4 = jax.random.split(key, 4)
    lim1 = 1.0 / (d_model ** 0.5)
    lim2 = 1.0 / (hidden ** 0.5)
    w1 = jax.random.uniform(k1, (d_model, hidden), dtype, -lim1, lim1)
    b1 = jax.random.uniform(k2, (hidden,), dtype, -lim1, lim1)
    w2 = jax.random.uniform(k3, (hidden, d_model), dtype, -lim2, lim2)
    b2 = jax.random.uniform(k4, (d_model,), dtype, -lim2, lim2)
    return w1, b1, w2, b2


def _reference(x, w1, b1, w2, b2):
    # Pure-JAX reference in f32 (dropout is identity at inference).
    x = x.astype(jnp.float32)
    w1, b1 = w1.astype(jnp.float32), b1.astype(jnp.float32)
    w2, b2 = w2.astype(jnp.float32), b2.astype(jnp.float32)
    return jnp.maximum(x @ w1 + b1, 0.0) @ w2 + b2


if __name__ == "__main__":
    key = jax.random.PRNGKey(0)
    kx, kp, kx2, kp2 = jax.random.split(key, 4)

    # --- Small test, exact f32 compute (exercises padding of tiny dims).
    batch, seq, d_model, hidden = 2, 8, 32, 64
    x = jax.random.normal(kx, (batch, seq, d_model), jnp.float32)
    w1, b1, w2, b2 = init_params(kp, d_model, hidden)
    ref = _reference(x, w1, b1, w2, b2)

    out_f32 = jax.block_until_ready(
        positionwise_feed_forward(x, w1, b1, w2, b2, compute_dtype="float32"))
    assert out_f32.shape == (batch, seq, d_model)
    assert jnp.allclose(out_f32, ref, atol=1e-4, rtol=1e-4), "mismatch (f32)"

    # --- Same shapes, default bf16 compute (mixed precision -> loose tol).
    out_bf16c = jax.block_until_ready(
        positionwise_feed_forward(x, w1, b1, w2, b2))
    assert jnp.allclose(out_bf16c, ref, atol=5e-2, rtol=5e-2), \
        "mismatch (bf16 compute)"

    # --- bf16 inputs/outputs: exercises the f32-accumulator-scratch kernel.
    xb = x.astype(jnp.bfloat16)
    w1b_, b1b_, w2b_, b2b_ = (w1.astype(jnp.bfloat16), b1.astype(jnp.bfloat16),
                              w2.astype(jnp.bfloat16), b2.astype(jnp.bfloat16))
    out_bf16 = jax.block_until_ready(
        positionwise_feed_forward(xb, w1b_, b1b_, w2b_, b2b_))
    assert out_bf16.dtype == jnp.bfloat16
    assert jnp.allclose(out_bf16.astype(jnp.float32),
                        _reference(xb, w1b_, b1b_, w2b_, b2b_),
                        atol=5e-2, rtol=5e-2), "mismatch (bf16 io)"

    # --- Multi-tile test: multiple row tiles and hidden chunks (accumulator
    #     init / finalize + degenerate-grid guard paths), modest shapes.
    batch2, seq2, d_model2, hidden2 = 2, 64, 256, 512
    x2 = jax.random.normal(kx2, (batch2, seq2, d_model2), jnp.float32)
    w1c, b1c, w2c, b2c = init_params(kp2, d_model2, hidden2)
    out2 = jax.block_until_ready(
        positionwise_feed_forward(x2, w1c, b1c, w2c, b2c,
                                  block_m=64, block_h=128,
                                  compute_dtype="float32"))
    ref2 = _reference(x2, w1c, b1c, w2c, b2c)
    assert out2.shape == (batch2, seq2, d_model2)
    assert jnp.allclose(out2, ref2, atol=1e-3, rtol=1e-3), "mismatch (tiled)"

    print("KERNEL_OK")
</pallas_src>

<mosaic_0001>
module attributes {stable_mosaic.version = 11 : i64} {
  func.func @_ffn_kernel_inplace(%arg0: i32, %arg1: i32, %arg2: memref<8x128xf32, #tpu.memory_space<vmem>>, %arg3: memref<128x128xf32, #tpu.memory_space<vmem>>, %arg4: memref<1x128xf32, #tpu.memory_space<vmem>>, %arg5: memref<128x128xf32, #tpu.memory_space<vmem>>, %arg6: memref<1x128xf32, #tpu.memory_space<vmem>>, %arg7: memref<8x128xf32, #tpu.memory_space<vmem>>) attributes {dimension_semantics = [#tpu.dimension_semantics<parallel>, #tpu.dimension_semantics<arbitrary>], iteration_bounds = array<i64: 2, 1>, scalar_prefetch = 0 : i64, scratch_operands = 0 : i64, tpu.core_type = #tpu.core_type<tc>, window_params = [{transform_indices = @transform_0, window_bounds = array<i64: 8, 128>}, {transform_indices = @transform_1, window_bounds = array<i64: 128, 128>}, {transform_indices = @transform_2, window_bounds = array<i64: 1, 128>}, {transform_indices = @transform_3, window_bounds = array<i64: 128, 128>}, {pipeline_mode = #tpu.pipeline_mode<synchronous>, transform_indices = @transform_4, window_bounds = array<i64: 1, 128>}, {transform_indices = @transform_5, window_bounds = array<i64: 8, 128>}]} {
    %c0_i32 = arith.constant 0 : i32
    %0 = arith.cmpi eq, %arg1, %c0_i32 : i32
    %1 = arith.extui %0 : i1 to i32
    %c0_i32_0 = arith.constant 0 : i32
    %2 = arith.cmpi ne, %1, %c0_i32_0 : i32
    scf.if %2 {
      %c0_14 = arith.constant 0 : index
      %c0_15 = arith.constant 0 : index
      %16 = vector.load %arg6[%c0_14, %c0_15] : memref<1x128xf32, #tpu.memory_space<vmem>>, vector<1x128xf32>
      %17 = vector.shape_cast %16 : vector<1x128xf32> to vector<1x128xf32>
      %18 = vector.broadcast %17 : vector<1x128xf32> to vector<8x128xf32>
      %c0_16 = arith.constant 0 : index
      %c0_17 = arith.constant 0 : index
      %19 = vector.load %arg7[%c0_16, %c0_17] : memref<8x128xf32, #tpu.memory_space<vmem>>, vector<8x128xf32>
      tpu.vector_store %arg7[%c0_16, %c0_17], %18 {strides = array<i32>} : memref<8x128xf32, #tpu.memory_space<vmem>>, vector<8x128xf32>,
    } else {
    }
    %c0 = arith.constant 0 : index
    %c0_1 = arith.constant 0 : index
    %3 = vector.load %arg2[%c0, %c0_1] : memref<8x128xf32, #tpu.memory_space<vmem>>, vector<8x128xf32>
    %c0_2 = arith.constant 0 : index
    %c0_3 = arith.constant 0 : index
    %4 = vector.load %arg3[%c0_2, %c0_3] : memref<128x128xf32, #tpu.memory_space<vmem>>, vector<128x128xf32>
    %cst = arith.constant dense<0.000000e+00> : vector<8x128xf32>
    %5 = tpu.matmul %3, %4, %cst {dimension_numbers = #tpu.dot_dimension_numbers<[1], [0], [0], [1], [0, 0, 1, 1], [], []>} : vector<8x128xf32>, vector<128x128xf32>, vector<8x128xf32> -> vector<8x128xf32>
    %c0_4 = arith.constant 0 : index
    %c0_5 = arith.constant 0 : index
    %6 = vector.load %arg4[%c0_4, %c0_5] : memref<1x128xf32, #tpu.memory_space<vmem>>, vector<1x128xf32>
    %7 = vector.broadcast %6 : vector<1x128xf32> to vector<8x128xf32>
    %8 = arith.addf %5, %7 : vector<8x128xf32>
    %cst_6 = arith.constant 0.000000e+00 : f32
    %9 = vector.broadcast %cst_6 : f32 to vector<8x128xf32>
    %10 = arith.maximumf %8, %9 : vector<8x128xf32>
    %c0_7 = arith.constant 0 : index
    %c0_8 = arith.constant 0 : index
    %11 = vector.load %arg7[%c0_7, %c0_8] : memref<8x128xf32, #tpu.memory_space<vmem>>, vector<8x128xf32>
    %c0_9 = arith.constant 0 : index
    %c0_10 = arith.constant 0 : index
    %12 = vector.load %arg5[%c0_9, %c0_10] : memref<128x128xf32, #tpu.memory_space<vmem>>, vector<128x128xf32>
    %cst_11 = arith.constant dense<0.000000e+00> : vector<8x128xf32>
    %13 = tpu.matmul %10, %12, %cst_11 {dimension_numbers = #tpu.dot_dimension_numbers<[1], [0], [0], [1], [0, 0, 1, 1], [], []>} : vector<8x128xf32>, vector<128x128xf32>, vector<8x128xf32> -> vector<8x128xf32>
    %14 = arith.addf %11, %13 : vector<8x128xf32>
    %c0_12 = arith.constant 0 : index
    %c0_13 = arith.constant 0 : index
    %15 = vector.load %arg7[%c0_12, %c0_13] : memref<8x128xf32, #tpu.memory_space<vmem>>, vector<8x128xf32>
    tpu.vector_store %arg7[%c0_12, %c0_13], %14 {strides = array<i32>} : memref<8x128xf32, #tpu.memory_space<vmem>>, vector<8x128xf32>,
    return
  }
  func.func @transform_0(%arg0: i32, %arg1: i32) -> (i32, i32) {
    %c0_i32 = arith.constant 0 : i32
    %c0_i32_0 = arith.constant 0 : i32
    return %arg0, %c0_i32 : i32, i32
  }
  func.func @transform_1(%arg0: i32, %arg1: i32) -> (i32, i32) {
    %c0_i32 = arith.constant 0 : i32
    %c0_i32_0 = arith.constant 0 : i32
    return %c0_i32, %arg1 : i32, i32
  }
  func.func @transform_2(%arg0: i32, %arg1: i32) -> (i32, i32) {
    %c0_i32 = arith.constant 0 : i32
    %c0_i32_0 = arith.constant 0 : i32
    return %c0_i32, %arg1 : i32, i32
  }
  func.func @transform_3(%arg0: i32, %arg1: i32) -> (i32, i32) {
    %c0_i32 = arith.constant 0 : i32
    %c0_i32_0 = arith.constant 0 : i32
    return %arg1, %c0_i32 : i32, i32
  }
  func.func @transform_4(%arg0: i32, %arg1: i32) -> (i32, i32) {
    %c0_i32 = arith.constant 0 : i32
    %c0_i32_0 = arith.constant 0 : i32
    %c0_i32_1 = arith.constant 0 : i32
    return %c0_i32, %c0_i32_0 : i32, i32
  }
  func.func @transform_5(%arg0: i32, %arg1: i32) -> (i32, i32) {
    %c0_i32 = arith.constant 0 : i32
    %c0_i32_0 = arith.constant 0 : i32
    return %arg0, %c0_i32 : i32, i32
  }
}

</mosaic_0001>

<llo_original>
// kernel: positionwise_feed_forward.1
$region0: #{positionwise_feed_forward.1}
  #allocation0 [shape = 'u32[]', space=smem, size = 0x4, offset = 0x4, fixed_abs, tag = 'smem constant byte address 0x4 - core index']
  #allocation1 [shape = 'u32[144,128]{1,0:T(1,128)}', space=vmem, size = 0x12000, scoped, tag = 'internal scratch']
  %s0 = inlined_call_operand.vmem [shape: f32[16,128], index: 0, kind: input, shape index: {}]
  %s1 = inlined_call_operand.vmem [shape: f32[128,128], index: 1, kind: input, shape index: {}]
  %s2 = inlined_call_operand.vmem [shape: f32[1,128], index: 2, kind: input, shape index: {}]
  %s3 = inlined_call_operand.vmem [shape: f32[128,128], index: 3, kind: input, shape index: {}]
  %s4 = inlined_call_operand.vmem [shape: f32[1,128], index: 4, kind: input, shape index: {}]
  %s5 = inlined_call_operand.vmem [shape: f32[16,128], index: 5, kind: output, shape index: {}]
  %s6 = sld [smem:[#allocation0]]
  $region57: #{positionwise_feed_forward.1} parent=0
    _
  %s8 = ssub.s32 1, %s6
  %s9 = scalar_select 0, %s8, %s6
  loop: start=0, step=1, limit=4
  $region2: #{positionwise_feed_forward.1} parent=0 // loop_pre_header
    _
  $region3: #{positionwise_feed_forward.1} parent=0 // loop_header
    %s11 = sphi 0, %s15
    %p12 = scmp.ge.s32.totalorder %s11, 4
    %s18 = sphi 0, %s30
    %s19 = sphi 0, %s26
    %s20 = sphi 0, %s18
    %s21 = sphi 0, %s19
    %s22 = sphi 0, %s20
    %s23 = sphi 0, %s21
    %s33 = sphi 0, %s35
    %s36 = sphi 0, %s33
    %s37 = sphi 0, %s36
    %s53 = sphi 0, %s37
    %s59 = sphi 0, %s61
    %s62 = sphi 0, %s59
    %s63 = sphi 0, %s62
    %s79 = sphi 0, %s63
    %s85 = sphi 0, %s87
    %s88 = sphi 0, %s85
    %s89 = sphi 0, %s88
    %s105 = sphi 0, %s89
    %s111 = sphi 0, %s113
    %s114 = sphi 0, %s111
    %s115 = sphi 0, %s114
    %s131 = sphi 0, %s115
    %s135 = sphi 0, %s135
    %s137 = sphi 0, %s135
    %s138 = sphi 0, %s137
    %s152 = sphi 0, %s138
    %s158 = sphi 0, %s160
    %s161 = sphi 0, %s158
    %s162 = sphi 0, %s161
    %s178 = sphi 0, %s162
  $region4: #{positionwise_feed_forward.1} parent=0 // loop_header_branch
    %14 = sbr.rel (%p12) target = $region8
  $region5: #{positionwise_feed_forward.1} parent=0 // loop_body
    %s16 = ssub.s32 %s11, 1
    %s17 = ssub.s32 %s11, 2
    %s24 = sadd.s32 1, %s19
    %p25 = scmp.ge.s32.totalorder %s24, 1
    %s26 = scalar_select %p25, 0, %s24
    %s27 = sadd.s32 1, %s18
    %s28 = scalar_select %p25, %s27, %s18
    %p29 = scmp.ge.s32.totalorder %s28, 2
    %s30 = scalar_select %p29, 0, %s28
    %s31 = ssub.s32 %s18, %s30
    %p32 = scmp.eq.s32.totalorder %s31, 0
    %s34 = sadd.s32 %s33, 1
    %s35 = scalar_select %p32, %s33, %s34
    %p38 = pneg %p32
    %p39 = scmp.eq.s32.totalorder %s11, 1
    %p40 = por %p38, %p39
    %p41 = scmp.ne.s32.totalorder %s33, %s36
    %p42 = scmp.eq.s32.totalorder %s11, 0
    %p43 = por %p41, %p42
    %p44 = scmp.ne.s32.totalorder %s33, %s36
    %p45 = scmp.eq.s32.totalorder %s16, 1
    %p46 = por %p44, %p45
    %p47 = scmp.ne.s32.totalorder %s36, %s37
    %p48 = scmp.eq.s32.totalorder %s16, 0
    %p49 = por %p47, %p48
    %p50 = scmp.ne.s32.totalorder %s36, %s37
    %p51 = scmp.eq.s32.totalorder %s17, 1
    %p52 = por %p50, %p51
    %p54 = scmp.ne.s32.totalorder %s37, %s53
    %p55 = scmp.eq.s32.totalorder %s17, 0
    %p56 = por %p54, %p55
    %s57 = ssub.s32 %s19, %s26
    %p58 = scmp.eq.s32.totalorder %s57, 0
    %s60 = sadd.s32 %s59, 1
    %s61 = scalar_select %p58, %s59, %s60
    %p64 = pneg %p58
    %p65 = scmp.eq.s32.totalorder %s11, 1
    %p66 = por %p64, %p65
    %p67 = scmp.ne.s32.totalorder %s59, %s62
    %p68 = scmp.eq.s32.totalorder %s11, 0
    %p69 = por %p67, %p68
    %p70 = scmp.ne.s32.totalorder %s59, %s62
    %p71 = scmp.eq.s32.totalorder %s16, 1
    %p72 = por %p70, %p71
    %p73 = scmp.ne.s32.totalorder %s62, %s63
    %p74 = scmp.eq.s32.totalorder %s16, 0
    %p75 = por %p73, %p74
    %p76 = scmp.ne.s32.totalorder %s62, %s63
    %p77 = scmp.eq.s32.totalorder %s17, 1
    %p78 = por %p76, %p77
    %p80 = scmp.ne.s32.totalorder %s63, %s79
    %p81 = scmp.eq.s32.totalorder %s17, 0
    %p82 = por %p80, %p81
    %s83 = ssub.s32 %s19, %s26
    %p84 = scmp.eq.s32.totalorder %s83, 0
    %s86 = sadd.s32 %s85, 1
    %s87 = scalar_select %p84, %s85, %s86
    %p90 = pneg %p84
    %p91 = scmp.eq.s32.totalorder %s11, 1
    %p92 = por %p90, %p91
    %p93 = scmp.ne.s32.totalorder %s85, %s88
    %p94 = scmp.eq.s32.totalorder %s11, 0
    %p95 = por %p93, %p94
    %p96 = scmp.ne.s32.totalorder %s85, %s88
    %p97 = scmp.eq.s32.totalorder %s16, 1
    %p98 = por %p96, %p97
    %p99 = scmp.ne.s32.totalorder %s88, %s89
    %p100 = scmp.eq.s32.totalorder %s16, 0
    %p101 = por %p99, %p100
    %p102 = scmp.ne.s32.totalorder %s88, %s89
    %p103 = scmp.eq.s32.totalorder %s17, 1
    %p104 = por %p102, %p103
    %p106 = scmp.ne.s32.totalorder %s89, %s105
    %p107 = scmp.eq.s32.totalorder %s17, 0
    %p108 = por %p106, %p107
    %s109 = ssub.s32 %s19, %s26
    %p110 = scmp.eq.s32.totalorder %s109, 0
    %s112 = sadd.s32 %s111, 1
    %s113 = scalar_select %p110, %s111, %s112
    %p116 = pneg %p110
    %p117 = scmp.eq.s32.totalorder %s11, 1
    %p118 = por %p116, %p117
    %p119 = scmp.ne.s32.totalorder %s111, %s114
    %p120 = scmp.eq.s32.totalorder %s11, 0
    %p121 = por %p119, %p120
    %p122 = scmp.ne.s32.totalorder %s111, %s114
    %p123 = scmp.eq.s32.totalorder %s16, 1
    %p124 = por %p122, %p123
    %p125 = scmp.ne.s32.totalorder %s114, %s115
    %p126 = scmp.eq.s32.totalorder %s16, 0
    %p127 = por %p125, %p126
    %p128 = scmp.ne.s32.totalorder %s114, %s115
    %p129 = scmp.eq.s32.totalorder %s17, 1
    %p130 = por %p128, %p129
    %p132 = scmp.ne.s32.totalorder %s115, %s131
    %p133 = scmp.eq.s32.totalorder %s17, 0
    %p134 = por %p132, %p133
    %s136 = sadd.s32 %s135, 1
    %p139 = scmp.eq.s32.totalorder %s11, 1
    %p140 = scmp.ne.s32.totalorder %s135, %s137
    %p141 = scmp.eq.s32.totalorder %s11, 0
    %p142 = por %p140, %p141
    %p143 = scmp.ne.s32.totalorder %s135, %s137
    %p144 = scmp.eq.s32.totalorder %s16, 1
    %p145 = por %p143, %p144
    %p146 = scmp.ne.s32.totalorder %s137, %s138
    %p147 = scmp.eq.s32.totalorder %s16, 0
    %p148 = por %p146, %p147
    %p149 = scmp.ne.s32.totalorder %s137, %s138
    %p150 = scmp.eq.s32.totalorder %s17, 1
    %p151 = por %p149, %p150
    %p153 = scmp.ne.s32.totalorder %s138, %s152
    %p154 = scmp.eq.s32.totalorder %s17, 0
    %p155 = por %p153, %p154
    %s156 = ssub.s32 %s18, %s30
    %p157 = scmp.eq.s32.totalorder %s156, 0
    %s159 = sadd.s32 %s158, 1
    %s160 = scalar_select %p157, %s158, %s159
    %p163 = pneg %p157
    %p164 = scmp.eq.s32.totalorder %s11, 1
    %p165 = por %p163, %p164
    %p166 = scmp.ne.s32.totalorder %s158, %s161
    %p167 = scmp.eq.s32.totalorder %s11, 0
    %p168 = por %p166, %p167
    %p169 = scmp.ne.s32.totalorder %s158, %s161
    %p170 = scmp.eq.s32.totalorder %s16, 1
    %p171 = por %p169, %p170
    %p172 = scmp.ne.s32.totalorder %s161, %s162
    %p173 = scmp.eq.s32.totalorder %s16, 0
    %p174 = por %p172, %p173
    %p175 = scmp.ne.s32.totalorder %s161, %s162
    %p176 = scmp.eq.s32.totalorder %s17, 1
    %p177 = por %p175, %p176
    %p179 = scmp.ne.s32.totalorder %s162, %s178
    %p180 = scmp.eq.s32.totalorder %s17, 0
    %p181 = por %p179, %p180
    %p182 = scmp.le.s32.totalorder 1, %s11
    %p183 = scmp.lt.s32.totalorder %s11, 3
    %p184 = pnand %p182, %p183
    %p185 = pneg %p184
    // Predicated region
    $region9: #{positionwise_feed_forward.1} parent=5 // pred_check
      _
    $region10: #{positionwise_feed_forward.1} parent=5 // pred_check_branch
      %187 = sbr.rel (%p184) target = $region12
    $region11: #{positionwise_feed_forward.1} parent=5 // pred_region
      %s188 = ssub.s32 %s11, 1
      // Predicated region
      $region13: #{positionwise_feed_forward.1} parent=11 // pred_check
        %p189 = pneg %p75
      $region14: #{positionwise_feed_forward.1} parent=11 // pred_check_branch
        %191 = sbr.rel (%p189) target = $region16
      $region15: #{positionwise_feed_forward.1} parent=11 // pred_region
        %p192 = scmp.lt.s32.totalorder %s21, 0
        %s193 = scalar_select %p192, %s21, 0
        %s194 = smul.addr %s193, 8
        %s195 = scalar_lea.vmem %s1, %s194
      $region16: #{positionwise_feed_forward.1} parent=11 // pred_fallthru
        _
      // Predicated region
      $region17: #{positionwise_feed_forward.1} parent=11 // pred_check
        %p196 = pneg %p101
      $region18: #{positionwise_feed_forward.1} parent=11 // pred_check_branch
        %198 = sbr.rel (%p196) target = $region20
      $region19: #{positionwise_feed_forward.1} parent=11 // pred_region
        %p199 = scmp.lt.s32.totalorder %s21, 0
        %s200 = scalar_select %p199, %s21, 0
        %s201 = scalar_lea.vmem %s2, %s200
      $region20: #{positionwise_feed_forward.1} parent=11 // pred_fallthru
        _
      // Predicated region
      $region21: #{positionwise_feed_forward.1} parent=11 // pred_check
        %p202 = pneg %p127
      $region22: #{positionwise_feed_forward.1} parent=11 // pred_check_branch
        %204 = sbr.rel (%p202) target = $region24
      $region23: #{positionwise_feed_forward.1} parent=11 // pred_region
        %s205 = smul.u32 16, %s21
        %p206 = scmp.lt.s32.totalorder %s205, 15
        %s207 = scalar_select %p206, %s205, 15
        %s208 = smul.addr %s207, 8
        %s209 = scalar_lea.vmem %s3, %s208
        %s210 = smul.u32 16, %s21
      $region24: #{positionwise_feed_forward.1} parent=11 // pred_fallthru
        _
      // Predicated region
      $region25: #{positionwise_feed_forward.1} parent=11 // pred_check
        %p211 = pneg %p148
      $region26: #{positionwise_feed_forward.1} parent=11 // pred_check_branch
        %213 = sbr.rel (%p211) target = $region28
      $region27: #{positionwise_feed_forward.1} parent=11 // pred_region
        _
      $region28: #{positionwise_feed_forward.1} parent=11 // pred_fallthru
        _
    $region12: #{positionwise_feed_forward.1} parent=5 // pred_fallthru
      _
    %p214 = scmp.lt.s32.totalorder %s11, 2
    // Predicated region
    $region29: #{positionwise_feed_forward.1} parent=5 // pred_check
      %p215 = pneg %p214
    $region30: #{positionwise_feed_forward.1} parent=5 // pred_check_branch
      %217 = sbr.rel (%p215) target = $region32
    $region31: #{positionwise_feed_forward.1} parent=5 // pred_region
      // Predicated region
      $region33: #{positionwise_feed_forward.1} parent=31 // pred_check
        %p218 = pneg %p43
      $region34: #{positionwise_feed_forward.1} parent=31 // pred_check_branch
        %220 = sbr.rel (%p218) target = $region36
      $region35: #{positionwise_feed_forward.1} parent=31 // pred_region
        %p221 = scmp.lt.s32.totalorder %s18, 1
        %s222 = scalar_select %p221, %s18, 1
        %s223 = smul.addr %s222, 8
        %s224 = scalar_lea.vmem %s0, %s223
      $region36: #{positionwise_feed_forward.1} parent=31 // pred_fallthru
        _
    $region32: #{positionwise_feed_forward.1} parent=5 // pred_fallthru
      _
    %p225 = scmp.le.s32.totalorder 1, %s11
    %p226 = scmp.lt.s32.totalorder %s11, 3
    %p227 = pnand %p225, %p226
    %p228 = pneg %p227
    // Predicated region
    $region37: #{positionwise_feed_forward.1} parent=5 // pred_check
      _
    $region38: #{positionwise_feed_forward.1} parent=5 // pred_check_branch
      %230 = sbr.rel (%p227) target = $region40
    $region39: #{positionwise_feed_forward.1} parent=5 // pred_region
      %s231 = ssub.s32 %s11, 1
      %p232 = scmp.lt.s32.totalorder %s20, 1
      %s233 = scalar_select %p232, %s20, 1
      %s234 = smul.addr %s233, 8
      %s235 = scalar_lea.vmem %s0, %s234
      %p236 = pneg %p49
      %p237 = pneg %p46
      %p238 = scmp.lt.s32.totalorder %s21, 0
      %s239 = scalar_select %p238, %s21, 0
      %s240 = smul.addr %s239, 8
      %s241 = scalar_lea.vmem %s1, %s240
      %p242 = pneg %p75
      %p243 = pneg %p72
      %p244 = scmp.lt.s32.totalorder %s21, 0
      %s245 = scalar_select %p244, %s21, 0
      %s246 = scalar_lea.vmem %s2, %s245
      %p247 = pneg %p101
      %p248 = pneg %p98
      %s249 = smul.u32 16, %s21
      %p250 = scmp.lt.s32.totalorder %s249, 15
      %s251 = scalar_select %p250, %s249, 15
      %s252 = smul.addr %s251, 8
      %s253 = scalar_lea.vmem %s3, %s252
      %p254 = pneg %p127
      %p255 = pneg %p124
      %p256 = pneg %p148
      %p257 = pneg %p145
      %p258 = pneg %p174
      %p259 = pneg %p171
      %p260 = scmp.lt.s32.totalorder %s20, 1
      %s261 = scalar_select %p260, %s20, 1
      %s262 = smul.addr %s261, 8
      %s263 = scalar_lea.vmem %s5, %s262
      %p264 = scmp.lt.s32.totalorder %s20, 1
      %s265 = scalar_select %p264, %s20, 1
      %s266 = smul.addr %s265, 8
      %s267 = scalar_lea.vmem %s0, %s266
      %p268 = scmp.lt.s32.totalorder %s21, 0
      %s269 = scalar_select %p268, %s21, 0
      %s270 = smul.addr %s269, 8
      %s271 = scalar_lea.vmem %s1, %s270
      %p272 = scmp.lt.s32.totalorder %s21, 0
      %s273 = scalar_select %p272, %s21, 0
      %s274 = scalar_lea.vmem %s2, %s273
      %s275 = smul.u32 16, %s21
      %p276 = scmp.lt.s32.totalorder %s275, 15
      %s277 = scalar_select %p276, %s275, 15
      %s278 = smul.addr %s277, 8
      %s279 = scalar_lea.vmem %s3, %s278
      %s280 = smul.u32 16, %s21
      %p281 = scmp.lt.s32.totalorder %s20, 1
      %s282 = scalar_select %p281, %s20, 1
      %s283 = smul.addr %s282, 8
      %s284 = scalar_lea.vmem %s5, %s283
      %p285 = scmp.eq.s32.totalorder %s21, 0
      // Predicated region
      $region41: #{positionwise_feed_forward.1} parent=39 // pred_check
        %p286 = pneg %p285
      $region42: #{positionwise_feed_forward.1} parent=39 // pred_check_branch
        %288 = sbr.rel (%p286) target = $region44
      $region43: #{positionwise_feed_forward.1} parent=39 // pred_region
        %v289 = vld [vmem:[%s4] sm:$0x1]
        %v291 = vlaneseq
        %v292 = vshrl.u32 %v291, 7
        %v293 = vsub.s32 0, %v292
        %v294 = vrot.slane %v289, %v293
        %296 = vst [vmem:[%s284] sm:$0xff] %v294
      $region44: #{positionwise_feed_forward.1} parent=39 // pred_fallthru
        _
      %v297 = vld [vmem:[%s267] sm:$0xff]
      %v298 = vld [vmem:[%s271] sm:$0xff]
      %v299 = vld [vmem:[%s271 + $0x8] sm:$0xff]
      %v300 = vld [vmem:[%s271 + $0x10] sm:$0xff]
      %v301 = vld [vmem:[%s271 + $0x18] sm:$0xff]
      %v302 = vld [vmem:[%s271 + $0x20] sm:$0xff]
      %v303 = vld [vmem:[%s271 + $0x28] sm:$0xff]
      %v304 = vld [vmem:[%s271 + $0x30] sm:$0xff]
      %v305 = vld [vmem:[%s271 + $0x38] sm:$0xff]
      %v306 = vld [vmem:[%s271 + $0x40] sm:$0xff]
      %v307 = vld [vmem:[%s271 + $0x48] sm:$0xff]
      %v308 = vld [vmem:[%s271 + $0x50] sm:$0xff]
      %v309 = vld [vmem:[%s271 + $0x58] sm:$0xff]
      %v310 = vld [vmem:[%s271 + $0x60] sm:$0xff]
      %v311 = vld [vmem:[%s271 + $0x68] sm:$0xff]
      %v312 = vld [vmem:[%s271 + $0x70] sm:$0xff]
      %v313 = vld [vmem:[%s271 + $0x78] sm:$0xff]
      %v314 = vld [vmem:[%s274] sm:$0x1]
      %v316 = vlaneseq
      %v317 = vshrl.u32 %v316, 7
      %v318 = vsub.s32 0, %v317
      %v319 = vrot.slane %v314, %v318
      %321 = vmatprep.subr.mxu0 0.0
      %322 = vmatpush1.msra.mxu0 %v298
      %323 = vmatprep.subr.mxu0 0.0
      %324 = vmatpush1.msra.mxu0 %v299
      %325 = vmatprep.subr.mxu0 0.0
      %326 = vmatpush1.msra.mxu0 %v300
      %327 = vmatprep.subr.mxu0 0.0
      %328 = vmatpush1.msra.mxu0 %v301
      %329 = vmatprep.subr.mxu0 0.0
      %330 = vmatpush1.msra.mxu0 %v302
      %331 = vmatprep.subr.mxu0 0.0
      %332 = vmatpush1.msra.mxu0 %v303
      %333 = vmatprep.subr.mxu0 0.0
      %334 = vmatpush1.msra.mxu0 %v304
      %335 = vmatprep.subr.mxu0 0.0
      %336 = vmatpush1.msra.mxu0 %v305
      %337 = vmatprep.subr.mxu0 0.0
      %338 = vmatpush1.msra.mxu0 %v306
      %339 = vmatprep.subr.mxu0 0.0
      %340 = vmatpush1.msra.mxu0 %v307
      %341 = vmatprep.subr.mxu0 0.0
      %342 = vmatpush1.msra.mxu0 %v308
      %343 = vmatprep.subr.mxu0 0.0
      %344 = vmatpush1.msra.mxu0 %v309
      %345 = vmatprep.subr.mxu0 0.0
      %346 = vmatpush1.msra.mxu0 %v310
      %347 = vmatprep.subr.mxu0 0.0
      %348 = vmatpush1.msra.mxu0 %v311
      %349 = vmatprep.subr.mxu0 0.0
      %350 = vmatpush1.msra.mxu0 %v312
      %351 = vmatprep.subr.mxu0 0.0
      %352 = vmatpush1.msra.mxu0 %v313
      %353 = vmatprep.subr.mxu0 0.0
      %354 = vmatpush1.msra.mxu0 0.0
      %355 = vmatprep.subr.mxu0 0.0
      %356 = vmatpush1.msra.mxu0 0.0
      %357 = vmatprep.subr.mxu0 0.0
      %358 = vmatpush1.msra.mxu0 0.0
      %359 = vmatprep.subr.mxu0 0.0
      %360 = vmatpush1.msra.mxu0 0.0
      %361 = vmatprep.subr.mxu0 0.0
      %362 = vmatpush1.msra.mxu0 0.0
      %363 = vmatprep.subr.mxu0 0.0
      %364 = vmatpush1.msra.mxu0 0.0
      %365 = vmatprep.subr.mxu0 0.0
      %366 = vmatpush1.msra.mxu0 0.0
      %367 = vmatprep.subr.mxu0 0.0
      %368 = vmatpush1.msra.mxu0 0.0
      %369 = vmatprep.subr.mxu0 0.0
      %370 = vmatpush1.msra.mxu0 0.0
      %371 = vmatprep.subr.mxu0 0.0
      %372 = vmatpush1.msra.mxu0 0.0
      %373 = vmatprep.subr.mxu0 0.0
      %374 = vmatpush1.msra.mxu0 0.0
      %375 = vmatprep.subr.mxu0 0.0
      %376 = vmatpush1.msra.mxu0 0.0
      %377 = vmatprep.subr.mxu0 0.0
      %378 = vmatpush1.msra.mxu0 0.0
      %379 = vmatprep.subr.mxu0 0.0
      %380 = vmatpush1.msra.mxu0 0.0
      %381 = vmatprep.subr.mxu0 0.0
      %382 = vmatpush1.msra.mxu0 0.0
      %383 = vmatprep.subr.mxu0 0.0
      %384 = vmatpush1.msra.mxu0 0.0
      %385 = vmatprep.mubr.f32.mxu0 0.0
      %386 = vmatmul.mubr.f32.gmra.mrb[0].mxu0 %v297
      %v387 = vpop.f32.mrb[0].mxu0
      %v388 = vadd.f32 %v319, %v387
      %v389 = vpop.f32.mrb[0].mxu0
      %390 = vdwg.mxu0
      %v391 = vmax.f32 %v388, 0.0
      %v392 = vld [vmem:[%s284] sm:$0xff]
      %v393 = vld [vmem:[%s279] sm:$0xff]
      %v394 = vld [vmem:[%s279 + $0x8] sm:$0xff]
      %v395 = vld [vmem:[%s279 + $0x10] sm:$0xff]
      %v396 = vld [vmem:[%s279 + $0x18] sm:$0xff]
      %v397 = vld [vmem:[%s279 + $0x20] sm:$0xff]
      %v398 = vld [vmem:[%s279 + $0x28] sm:$0xff]
      %v399 = vld [vmem:[%s279 + $0x30] sm:$0xff]
      %v400 = vld [vmem:[%s279 + $0x38] sm:$0xff]
      %v401 = vld [vmem:[%s279 + $0x40] sm:$0xff]
      %v402 = vld [vmem:[%s279 + $0x48] sm:$0xff]
      %v403 = vld [vmem:[%s279 + $0x50] sm:$0xff]
      %v404 = vld [vmem:[%s279 + $0x58] sm:$0xff]
      %v405 = vld [vmem:[%s279 + $0x60] sm:$0xff]
      %v406 = vld [vmem:[%s279 + $0x68] sm:$0xff]
      %v407 = vld [vmem:[%s279 + $0x70] sm:$0xff]
      %v408 = vld [vmem:[%s279 + $0x78] sm:$0xff]
      %409 = vmatprep.subr.mxu0 0.0
      %410 = vmatpush1.msra.mxu0 %v393
      %411 = vmatprep.subr.mxu0 0.0
      %412 = vmatpush1.msra.mxu0 %v394
      %413 = vmatprep.subr.mxu0 0.0
      %414 = vmatpush1.msra.mxu0 %v395
      %415 = vmatprep.subr.mxu0 0.0
      %416 = vmatpush1.msra.mxu0 %v396
      %417 = vmatprep.subr.mxu0 0.0
      %418 = vmatpush1.msra.mxu0 %v397
      %419 = vmatprep.subr.mxu0 0.0
      %420 = vmatpush1.msra.mxu0 %v398
      %421 = vmatprep.subr.mxu0 0.0
      %422 = vmatpush1.msra.mxu0 %v399
      %423 = vmatprep.subr.mxu0 0.0
      %424 = vmatpush1.msra.mxu0 %v400
      %425 = vmatprep.subr.mxu0 0.0
      %426 = vmatpush1.msra.mxu0 %v401
      %427 = vmatprep.subr.mxu0 0.0
      %428 = vmatpush1.msra.mxu0 %v402
      %429 = vmatprep.subr.mxu0 0.0
      %430 = vmatpush1.msra.mxu0 %v403
      %431 = vmatprep.subr.mxu0 0.0
      %432 = vmatpush1.msra.mxu0 %v404
      %433 = vmatprep.subr.mxu0 0.0
      %434 = vmatpush1.msra.mxu0 %v405
      %435 = vmatprep.subr.mxu0 0.0
      %436 = vmatpush1.msra.mxu0 %v406
      %437 = vmatprep.subr.mxu0 0.0
      %438 = vmatpush1.msra.mxu0 %v407
      %439 = vmatprep.subr.mxu0 0.0
      %440 = vmatpush1.msra.mxu0 %v408
      %441 = vmatprep.subr.mxu0 0.0
      %442 = vmatpush1.msra.mxu0 0.0
      %443 = vmatprep.subr.mxu0 0.0
      %444 = vmatpush1.msra.mxu0 0.0
      %445 = vmatprep.subr.mxu0 0.0
      %446 = vmatpush1.msra.mxu0 0.0
      %447 = vmatprep.subr.mxu0 0.0
      %448 = vmatpush1.msra.mxu0 0.0
      %449 = vmatprep.subr.mxu0 0.0
      %450 = vmatpush1.msra.mxu0 0.0
      %451 = vmatprep.subr.mxu0 0.0
      %452 = vmatpush1.msra.mxu0 0.0
      %453 = vmatprep.subr.mxu0 0.0
      %454 = vmatpush1.msra.mxu0 0.0
      %455 = vmatprep.subr.mxu0 0.0
      %456 = vmatpush1.msra.mxu0 0.0
      %457 = vmatprep.subr.mxu0 0.0
      %458 = vmatpush1.msra.mxu0 0.0
      %459 = vmatprep.subr.mxu0 0.0
      %460 = vmatpush1.msra.mxu0 0.0
      %461 = vmatprep.subr.mxu0 0.0
      %462 = vmatpush1.msra.mxu0 0.0
      %463 = vmatprep.subr.mxu0 0.0
      %464 = vmatpush1.msra.mxu0 0.0
      %465 = vmatprep.subr.mxu0 0.0
      %466 = vmatpush1.msra.mxu0 0.0
      %467 = vmatprep.subr.mxu0 0.0
      %468 = vmatpush1.msra.mxu0 0.0
      %469 = vmatprep.subr.mxu0 0.0
      %470 = vmatpush1.msra.mxu0 0.0
      %471 = vmatprep.subr.mxu0 0.0
      %472 = vmatpush1.msra.mxu0 0.0
      %473 = vmatprep.mubr.f32.mxu0 0.0
      %474 = vmatmul.mubr.f32.gmra.mrb[0].mxu0 %v391
      %v475 = vpop.f32.mrb[0].mxu0
      %v476 = vadd.f32 0.0, %v475
      %v477 = vpop.f32.mrb[0].mxu0
      %478 = vdwg.mxu0
      %v479 = vadd.f32 %v392, %v476
      %480 = vst [vmem:[%s284] sm:$0xff] %v479
      %p481 = scmp.lt.s32.totalorder %s20, 1
      %s482 = scalar_select %p481, %s20, 1
      %s483 = smul.addr %s482, 8
      %s484 = scalar_lea.vmem %s5, %s483
      // Predicated region
      $region45: #{positionwise_feed_forward.1} parent=39 // pred_check
        %p485 = pneg %p171
      $region46: #{positionwise_feed_forward.1} parent=39 // pred_check_branch
        %487 = sbr.rel (%p485) target = $region48
      $region47: #{positionwise_feed_forward.1} parent=39 // pred_region
        _
      $region48: #{positionwise_feed_forward.1} parent=39 // pred_fallthru
        _
    $region40: #{positionwise_feed_forward.1} parent=5 // pred_fallthru
      _
    %p488 = scmp.le.s32.totalorder 2, %s11
    // Predicated region
    $region49: #{positionwise_feed_forward.1} parent=5 // pred_check
      %p489 = pneg %p488
    $region50: #{positionwise_feed_forward.1} parent=5 // pred_check_branch
      %491 = sbr.rel (%p489) target = $region52
    $region51: #{positionwise_feed_forward.1} parent=5 // pred_region
      %s492 = ssub.s32 %s11, 2
      // Predicated region
      $region53: #{positionwise_feed_forward.1} parent=51 // pred_check
        %p493 = pneg %p177
      $region54: #{positionwise_feed_forward.1} parent=51 // pred_check_branch
        %495 = sbr.rel (%p493) target = $region56
      $region55: #{positionwise_feed_forward.1} parent=51 // pred_region
        %p496 = scmp.lt.s32.totalorder %s22, 1
        %s497 = scalar_select %p496, %s22, 1
        %s498 = smul.addr %s497, 8
        %s499 = scalar_lea.vmem %s5, %s498
      $region56: #{positionwise_feed_forward.1} parent=51 // pred_fallthru
        _
    $region52: #{positionwise_feed_forward.1} parent=5 // pred_fallthru
      _
  $region6: #{positionwise_feed_forward.1} parent=0 // loop_footer
    %s15 = sadd.s32 1, %s11
  $region7: #{positionwise_feed_forward.1} parent=0 // loop_footer_branch
    %10 = sbr.rel target = $region3
  $region8: #{positionwise_feed_forward.1} parent=0 // loop_exit
    _

</llo_original>
